<compile_context>
chip_gen: v7x
topology: tpu7x:2x2x1
jax: 0.10.0
libtpu: 0.0.40
codegen_flags: <defaults>
</compile_context>

<pallas_src>
import functools
import math

import jax
import jax.numpy as jnp
from jax import lax
from jax.experimental import pallas as pl
from jax.experimental.pallas import tpu as pltpu

_NEG_LOGIT = -1e30                 # bias for padded vocab columns
_FALLBACK_VMEM = 64 * 1024 * 1024  # conservative (v7x per-TC capacity)


# ------------------------------ small helpers ------------------------------

def _round_up(x, m):
    return (x + m - 1) // m * m


def _pick_div(total, candidates):
    """Largest candidate that divides `total` (candidates end in 128; `total`
    is always a 128 multiple so this always succeeds)."""
    for c in candidates:
        if c <= total and total % c == 0:
            return c
    return total


def _vmem_budget():
    """Generation-aware VMEM sizing.

    Returns (vmem_limit_bytes handed to Mosaic, tile-sizing budget)."""
    cap = _FALLBACK_VMEM
    try:
        info = pltpu.get_tpu_info()
        cap = int(getattr(info, "vmem_capacity_bytes", cap)) or cap
    except Exception:
        pass
    limit = int(cap * 0.75)          # leave compiler headroom (48M on v7x, 96M on v6e)
    budget = int(limit * 0.8)        # what we size resident/streamed tiles against
    return limit, budget


# ----------------------------- Pallas kernels -----------------------------

def _linear_kernel(x_ref, w_ref, b_ref, o_ref, acc_ref):
    # Grid = (row tiles, out-feature tiles, K tiles [arbitrary]).
    k = pl.program_id(2)

    @pl.when(k == 0)
    def _init():
        acc_ref[...] = jnp.zeros_like(acc_ref)

    acc_ref[...] += jnp.dot(x_ref[...], w_ref[...],
                            preferred_element_type=jnp.float32)

    @pl.when(k == pl.num_programs(2) - 1)
    def _finalize():
        o_ref[...] = (acc_ref[...] + b_ref[...]).astype(o_ref.dtype)


def _score_loss_kernel(x_ref, w_ref, b_ref, tgt_ref, logp_ref, loss_ref,
                       m_sc, l_sc, sum_sc, tgt_sc, pad_sc, *,
                       sv, conf, k_const, padding_idx,
                       v, v_pad, tn, num_v_tiles, w_resident):
    # Grid = (row tiles [parallel], vocab tiles [arbitrary]).
    #   x_ref   : (TM, Hp)         bf16, resident across the vocab axis
    #   w_ref   : (Hp, Vp)|(Hp,TN) bf16, VMEM-resident or streamed
    #   b_ref   : (1, Vp)|(1, TN)  f32
    #   tgt_ref : (TM, 1)          int32, resident
    #   logp_ref: (TM, Vp)         f32 output block, resident across vocab axis
    #   loss_ref: (8, 128)         f32 lane-dense per-row-tile loss partial
    #   *_sc    : (TM, 1)          f32 streaming-softmax / loss scratch
    j = pl.program_id(1)
    col0 = pl.multiple_of(j * tn, tn)

    @pl.when(j == 0)
    def _init():
        m_sc[...] = jnp.full_like(m_sc, -jnp.inf)
        l_sc[...] = jnp.zeros_like(l_sc)
        sum_sc[...] = jnp.zeros_like(sum_sc)
        tgt_sc[...] = jnp.zeros_like(tgt_sc)
        pad_sc[...] = jnp.zeros_like(pad_sc)

    if w_resident:
        w_blk = w_ref[:, pl.ds(col0, tn)]
        b_blk = b_ref[:, pl.ds(col0, tn)]
    else:
        w_blk = w_ref[...]
        b_blk = b_ref[...]

    # Vocab-tile of logits, written raw into the resident output block.
    logits = jnp.dot(x_ref[...], w_blk,
                     preferred_element_type=jnp.float32) + b_blk
    logp_ref[:, pl.ds(col0, tn)] = logits

    # ---- streaming (online-softmax) statistics: overlap with next tile MXU ----
    tile_max = jnp.max(logits, axis=-1, keepdims=True)
    m_old = m_sc[...]
    m_new = jnp.maximum(m_old, tile_max)
    l_sc[...] = (jnp.exp(m_old - m_new) * l_sc[...]
                 + jnp.sum(jnp.exp(logits - m_new), axis=-1, keepdims=True))
    m_sc[...] = m_new

    tgt = tgt_ref[...]                                        # (TM, 1) int32
    col_local = lax.broadcasted_iota(jnp.int32, logits.shape, 1)
    if v_pad != v:                                            # static
        valid = (col_local + col0) < v
        sum_src = jnp.where(valid, logits, 0.0)
    else:
        sum_src = logits
    sum_sc[...] += jnp.sum(sum_src, axis=-1, keepdims=True)

    tgt_hit = col_local == (tgt - col0)                       # tile-local gather
    tgt_sc[...] += jnp.sum(jnp.where(tgt_hit, logits, 0.0),
                           axis=-1, keepdims=True)

    @pl.when(j == padding_idx // tn)                          # static tile index
    def _grab_pad():
        p = padding_idx % tn                                  # static 1-col slice
        pad_sc[...] = logits[:, p:p + 1]

    @pl.when(j == num_v_tiles - 1)
    def _finalize():
        lse = m_sc[...] + jnp.log(l_sc[...])                  # (TM, 1)

        # Light correction pass: raw logits -> log-probs, strip-mined per tile.
        @pl.loop(0, num_v_tiles)
        def _strip(s):
            c0 = pl.multiple_of(s * tn, tn)
            logp_ref[:, pl.ds(c0, tn)] = logp_ref[:, pl.ds(c0, tn)] - lse

        # Closed-form label-smoothing KL (reduction='sum'):
        #   per_row = K - [sv*sum(logp) + (conf-sv)*logp[tgt] - sv*logp[pad]]
        # rows with target == padding_idx contribute 0.
        logp_tgt = tgt_sc[...] - lse
        logp_pad = pad_sc[...] - lse
        row_sum = sum_sc[...] - float(v) * lse
        s_term = sv * row_sum + (conf - sv) * logp_tgt - sv * logp_pad
        loss_rows = jnp.where(tgt == padding_idx, 0.0, k_const - s_term)
        part = jnp.sum(loss_rows)                             # per-row-tile partial
        r_i = lax.broadcasted_iota(jnp.int32, loss_ref.shape, 0)
        c_i = lax.broadcasted_iota(jnp.int32, loss_ref.shape, 1)
        loss_ref[...] = jnp.where((r_i == 0) & (c_i == 0), part, 0.0)


# ------------------------------ kernel wrappers ------------------------------

def linear_pallas(x2d, pack):
    """y = x @ W + b with pre-padded/pre-cast bf16 W; K-tiled with f32 acc."""
    n, k_true = x2d.shape
    kp, fp = pack["w"].shape
    f = pack["out_features"]
    limit, budget = _vmem_budget()

    tk = _pick_div(kp, (512, 256, 128))
    tn = _pick_div(fp, (512, 256, 128))
    fixed = 2 * tk * tn * 2 + 2 * tn * 4            # streamed W slab + bias
    per_row = 2 * tk * 2 + 3 * tn * 4 + 32          # x tile (x2), out (x2), acc
    tm = max(16, min(512, (max(budget - fixed, 0) // per_row) // 16 * 16))
    tm = min(tm, max(16, _round_up(n, 16)))
    n_pad = _round_up(n, tm)

    x_p = jnp.pad(x2d, ((0, n_pad - n), (0, kp - k_true))).astype(jnp.bfloat16)

    y = pl.pallas_call(
        _linear_kernel,
        out_shape=jax.ShapeDtypeStruct((n_pad, fp), jnp.float32),
        grid=(n_pad // tm, fp // tn, kp // tk),
        in_specs=[
            pl.BlockSpec((tm, tk), lambda i, j, k: (i, k)),
            pl.BlockSpec((tk, tn), lambda i, j, k: (k, j)),
            pl.BlockSpec((1, tn), lambda i, j, k: (0, j)),
        ],
        out_specs=pl.BlockSpec((tm, tn), lambda i, j, k: (i, j)),
        scratch_shapes=[pltpu.VMEM((tm, tn), jnp.float32)],
        compiler_params=pltpu.CompilerParams(
            dimension_semantics=("parallel", "parallel", "arbitrary"),
            vmem_limit_bytes=limit),
    )(x_p, pack["w"], pack["b"])
    return y[:n, :f]


def fused_score_loss(x2d, targets, pack):
    """log_softmax(x @ W + b) and LabelSmoothingLoss (KL, 'sum') in one kernel.

    Returns (log_probs (N, V) f32, scalar loss f32)."""
    n, h = x2d.shape
    hp, v_pad = pack["w"].shape
    v = pack["v"]
    padding_idx = pack["padding_idx"]
    limit, budget = _vmem_budget()

    # W residency / vocab tile / row tile selection against the VMEM budget.
    w_bytes = hp * v_pad * 2
    w_resident = (2 * w_bytes + v_pad * 4) <= budget // 2
    if w_resident:
        tn = _pick_div(v_pad, (1024, 512, 256, 128))
        fixed = 2 * w_bytes + v_pad * 4
    else:
        tn = 128
        for cand in (1024, 512, 256, 128):
            if v_pad % cand == 0 and (2 * hp * cand * 2 + 2 * cand * 4) <= budget // 4:
                tn = cand
                break
        fixed = 2 * hp * tn * 2 + 2 * tn * 4
    # Resident per row: logp block (x2), x tile bf16 (x2), per-tile f32 temps.
    per_row = 2 * v_pad * 4 + 2 * hp * 2 + 4 * tn * 4 + 64
    tm = max(16, min(512, (max(budget - fixed, 0) // per_row) // 16 * 16))
    tm = min(tm, max(16, _round_up(n, 16)))
    n_pad = _round_up(n, tm)
    num_v_tiles = v_pad // tn
    num_row_tiles = n_pad // tm

    x_p = jnp.pad(x2d, ((0, n_pad - n), (0, hp - h))).astype(jnp.bfloat16)
    tgt = jnp.pad(targets.reshape(-1).astype(jnp.int32), (0, n_pad - n),
                  constant_values=padding_idx).reshape(n_pad, 1)

    if w_resident:
        w_spec = pl.BlockSpec((hp, v_pad), lambda i, j: (0, 0))
        b_spec = pl.BlockSpec((1, v_pad), lambda i, j: (0, 0))
    else:
        w_spec = pl.BlockSpec((hp, tn), lambda i, j: (0, j))
        b_spec = pl.BlockSpec((1, tn), lambda i, j: (0, j))

    kern = functools.partial(
        _score_loss_kernel, sv=pack["sv"], conf=pack["conf"],
        k_const=pack["k_const"], padding_idx=padding_idx,
        v=v, v_pad=v_pad, tn=tn, num_v_tiles=num_v_tiles, w_resident=w_resident)

    logp, loss_parts = pl.pallas_call(
        kern,
        out_shape=(jax.ShapeDtypeStruct((n_pad, v_pad), jnp.float32),
                   jax.ShapeDtypeStruct((num_row_tiles * 8, 128), jnp.float32)),
        grid=(num_row_tiles, num_v_tiles),
        in_specs=[
            pl.BlockSpec((tm, hp), lambda i, j: (i, 0)),     # x: resident over V
            w_spec,                                          # W: resident or streamed
            b_spec,
            pl.BlockSpec((tm, 1), lambda i, j: (i, 0)),      # targets
        ],
        out_specs=(
            pl.BlockSpec((tm, v_pad), lambda i, j: (i, 0)),  # logp resident
            pl.BlockSpec((8, 128), lambda i, j: (i, 0)),     # loss partial, lane dense
        ),
        scratch_shapes=[pltpu.VMEM((tm, 1), jnp.float32) for _ in range(5)],
        compiler_params=pltpu.CompilerParams(
            dimension_semantics=("parallel", "arbitrary"),
            vmem_limit_bytes=limit),
    )(x_p, pack["w"], pack["b"], tgt)

    # padded rows / padded tiles contribute exactly 0 to the partials.
    return logp[:n, :v], jnp.sum(loss_parts)


# ------------------------------ model wrapper ------------------------------

def init_params(key, hidden, vocab):
    """Deterministic synthetic parameters (shapes from __init__)."""
    k1, k2, k3 = jax.random.split(key, 3)
    return {
        # bi_attn_transform: Linear(hidden*4 -> hidden)
        "bi_attn_w": jax.random.normal(k1, (4 * hidden, hidden), jnp.float32)
        / jnp.sqrt(4.0 * hidden),
        "bi_attn_b": jnp.zeros((hidden,), jnp.float32),
        # compute_score: Linear(hidden -> tgt_vocab_size)
        "score_w": jax.random.normal(k2, (hidden, vocab), jnp.float32)
        / jnp.sqrt(1.0 * hidden),
        "score_b": jax.random.normal(k3, (vocab,), jnp.float32) * 0.01,
    }


def prepare_params(params, *, hidden, vocab, label_smoothing, padding_idx):
    """Pad + cast weights to MXU-friendly bf16 layouts ONCE (not per forward)
    and precompute the label-smoothing constants."""
    # TODO(synk): label_smoothing == 0 takes the nn.CrossEntropyLoss branch of
    # the original module; only the LabelSmoothingLoss path is implemented.
    assert 0.0 < label_smoothing <= 1.0
    assert 0 <= padding_idx < vocab

    h4 = 4 * hidden
    kp4 = _round_up(h4, 128)
    hp = _round_up(hidden, 128)
    vp = _round_up(vocab, 128)

    bi_w = jnp.pad(params["bi_attn_w"],
                   ((0, kp4 - h4), (0, hp - hidden))).astype(jnp.bfloat16)
    bi_b = jnp.pad(params["bi_attn_b"].reshape(1, -1).astype(jnp.float32),
                   ((0, 0), (0, hp - hidden)))
    sc_w = jnp.pad(params["score_w"],
                   ((0, hp - hidden), (0, vp - vocab))).astype(jnp.bfloat16)
    # Padded vocab columns get a hugely negative bias so they never influence
    # max / sum-of-exp; they are masked out of the logit row-sum in-kernel and
    # sliced away on return.
    sc_b = jnp.pad(params["score_b"].reshape(1, -1).astype(jnp.float32),
                   ((0, 0), (0, vp - vocab)), constant_values=_NEG_LOGIT)

    sv = label_smoothing / (vocab - 2)
    conf = 1.0 - label_smoothing
    k_const = (vocab - 2) * sv * math.log(sv)
    if conf > 0.0:
        k_const += conf * math.log(conf)

    return {
        "bi_attn": {"w": bi_w, "b": bi_b, "out_features": hidden},
        "score": {"w": sc_w, "b": sc_b, "v": vocab, "padding_idx": padding_idx,
                  "sv": sv, "conf": conf, "k_const": k_const},
    }


def tensor2tensor_forward(prep, fact_biattn_concat, decoder_outputs, targets):
    # TODO(synk): models.TransformerEncoder / TransformerDecoder / BiAttention /
    # NPM (and the pointer_network branch) are external modules whose code is
    # not provided; their outputs (fact_biattn_concat, decoder_outputs) are
    # taken as inputs instead of being recomputed.
    fd1, fl, h4 = fact_biattn_concat.shape
    fact_contexts = linear_pallas(
        fact_biattn_concat.reshape(fd1 * fl, h4), prep["bi_attn"])
    fact_contexts = fact_contexts.reshape(fd1, fl, -1)

    b, t, h = decoder_outputs.shape
    # scores = log_softmax(compute_score(outputs)); loss = LabelSmoothingLoss
    scores, mle_loss = fused_score_loss(
        decoder_outputs.reshape(b * t, h), targets.reshape(-1), prep["score"])
    scores = scores.reshape(b, t, -1)
    return {"mle_loss": mle_loss, "fact_contexts": fact_contexts}, scores


# ---------------------------------- main -----------------------------------

if __name__ == "__main__":
    B, T = 2, 7          # batch, decoder time steps (T=7 exercises row padding)
    H = 32               # config.hidden_size
    V = 1024             # config.tgt_vocab_size (exercises vocab/lane tiling)
    FD1, FD2, FD3 = 2, 2, 4   # fact dims -> fact rows = FD2 * FD3
    LABEL_SMOOTHING = 0.1
    PAD = 0              # tgt_padding_idx

    key = jax.random.PRNGKey(0)
    kp, k1, k2, k3 = jax.random.split(key, 4)

    params = init_params(kp, H, V)
    prep = prepare_params(params, hidden=H, vocab=V,
                          label_smoothing=LABEL_SMOOTHING, padding_idx=PAD)

    # Stand-ins for the external encoder/decoder/BiAttention outputs.
    fact_biattn = jax.random.normal(k1, (FD1, FD2 * FD3, 4 * H), jnp.float32)
    decoder_out = jax.random.normal(k2, (B, T, H), jnp.float32)
    targets = jax.random.randint(k3, (B, T), 1, V, dtype=jnp.int32)
    targets = targets.at[:, -1].set(PAD)  # include some padding targets

    ret, scores = tensor2tensor_forward(prep, fact_biattn, decoder_out, targets)

    jax.block_until_ready((ret["mle_loss"], ret["fact_contexts"], scores))
    print("KERNEL_OK")
</pallas_src>

<mosaic_0001>
module attributes {stable_mosaic.version = 11 : i64} {
  func.func @_linear_kernel(%arg0: i32, %arg1: i32, %arg2: i32, %arg3: memref<16x128xbf16, #tpu.memory_space<vmem>>, %arg4: memref<128x128xbf16, #tpu.memory_space<vmem>>, %arg5: memref<1x128xf32, #tpu.memory_space<vmem>>, %arg6: memref<16x128xf32, #tpu.memory_space<vmem>>, %arg7: memref<16x128xf32, #tpu.memory_space<vmem>>) attributes {dimension_semantics = [#tpu.dimension_semantics<parallel>, #tpu.dimension_semantics<parallel>, #tpu.dimension_semantics<arbitrary>], iteration_bounds = array<i64: 1, 1, 1>, scalar_prefetch = 0 : i64, scratch_operands = 1 : i64, tpu.core_type = #tpu.core_type<tc>, window_params = [{transform_indices = @transform_0, window_bounds = array<i64: 16, 128>}, {transform_indices = @transform_1, window_bounds = array<i64: 128, 128>}, {transform_indices = @transform_2, window_bounds = array<i64: 1, 128>}, {transform_indices = @transform_3, window_bounds = array<i64: 16, 128>}]} {
    %c0_i32 = arith.constant 0 : i32
    %0 = arith.cmpi eq, %arg2, %c0_i32 : i32
    %1 = arith.extui %0 : i1 to i32
    %c0_i32_0 = arith.constant 0 : i32
    %2 = arith.cmpi ne, %1, %c0_i32_0 : i32
    scf.if %2 {
      %cst_10 = arith.constant 0.000000e+00 : f32
      %12 = vector.broadcast %cst_10 : f32 to vector<16x128xf32>
      %c0_11 = arith.constant 0 : index
      %c0_12 = arith.constant 0 : index
      %13 = vector.load %arg7[%c0_11, %c0_12] : memref<16x128xf32, #tpu.memory_space<vmem>>, vector<16x128xf32>
      tpu.vector_store %arg7[%c0_11, %c0_12], %12 {strides = array<i32>} : memref<16x128xf32, #tpu.memory_space<vmem>>, vector<16x128xf32>,
    } else {
    }
    %c0 = arith.constant 0 : index
    %c0_1 = arith.constant 0 : index
    %3 = vector.load %arg7[%c0, %c0_1] : memref<16x128xf32, #tpu.memory_space<vmem>>, vector<16x128xf32>
    %c0_2 = arith.constant 0 : index
    %c0_3 = arith.constant 0 : index
    %4 = vector.load %arg3[%c0_2, %c0_3] : memref<16x128xbf16, #tpu.memory_space<vmem>>, vector<16x128xbf16>
    %c0_4 = arith.constant 0 : index
    %c0_5 = arith.constant 0 : index
    %5 = vector.load %arg4[%c0_4, %c0_5] : memref<128x128xbf16, #tpu.memory_space<vmem>>, vector<128x128xbf16>
    %cst = arith.constant dense<0.000000e+00> : vector<16x128xf32>
    %6 = tpu.matmul %4, %5, %cst {dimension_numbers = #tpu.dot_dimension_numbers<[1], [0], [0], [1], [0, 0, 1, 1], [], []>} : vector<16x128xbf16>, vector<128x128xbf16>, vector<16x128xf32> -> vector<16x128xf32>
    %7 = arith.addf %3, %6 : vector<16x128xf32>
    %c0_6 = arith.constant 0 : index
    %c0_7 = arith.constant 0 : index
    %8 = vector.load %arg7[%c0_6, %c0_7] : memref<16x128xf32, #tpu.memory_space<vmem>>, vector<16x128xf32>
    tpu.vector_store %arg7[%c0_6, %c0_7], %7 {strides = array<i32>} : memref<16x128xf32, #tpu.memory_space<vmem>>, vector<16x128xf32>,
    %c0_i32_8 = arith.constant 0 : i32
    %9 = arith.cmpi eq, %arg2, %c0_i32_8 : i32
    %10 = arith.extui %9 : i1 to i32
    %c0_i32_9 = arith.constant 0 : i32
    %11 = arith.cmpi ne, %10, %c0_i32_9 : i32
    scf.if %11 {
      %c0_10 = arith.constant 0 : index
      %c0_11 = arith.constant 0 : index
      %12 = vector.load %arg7[%c0_10, %c0_11] : memref<16x128xf32, #tpu.memory_space<vmem>>, vector<16x128xf32>
      %c0_12 = arith.constant 0 : index
      %c0_13 = arith.constant 0 : index
      %13 = vector.load %arg5[%c0_12, %c0_13] : memref<1x128xf32, #tpu.memory_space<vmem>>, vector<1x128xf32>
      %14 = vector.broadcast %13 : vector<1x128xf32> to vector<16x128xf32>
      %15 = arith.addf %12, %14 : vector<16x128xf32>
      %c0_14 = arith.constant 0 : index
      %c0_15 = arith.constant 0 : index
      %16 = vector.load %arg6[%c0_14, %c0_15] : memref<16x128xf32, #tpu.memory_space<vmem>>, vector<16x128xf32>
      tpu.vector_store %arg6[%c0_14, %c0_15], %15 {strides = array<i32>} : memref<16x128xf32, #tpu.memory_space<vmem>>, vector<16x128xf32>,
    } else {
    }
    return
  }
  func.func @transform_0(%arg0: i32, %arg1: i32, %arg2: i32) -> (i32, i32) {
    %c0_i32 = arith.constant 0 : i32
    return %arg0, %arg2 : i32, i32
  }
  func.func @transform_1(%arg0: i32, %arg1: i32, %arg2: i32) -> (i32, i32) {
    %c0_i32 = arith.constant 0 : i32
    return %arg2, %arg1 : i32, i32
  }
  func.func @transform_2(%arg0: i32, %arg1: i32, %arg2: i32) -> (i32, i32) {
    %c0_i32 = arith.constant 0 : i32
    %c0_i32_0 = arith.constant 0 : i32
    return %c0_i32, %arg1 : i32, i32
  }
  func.func @transform_3(%arg0: i32, %arg1: i32, %arg2: i32) -> (i32, i32) {
    %c0_i32 = arith.constant 0 : i32
    return %arg0, %arg1 : i32, i32
  }
}

</mosaic_0001>

<llo_original>
// kernel: tpu_custom_call.1
$region0: #{tpu_custom_call.1}
  #allocation0 [shape = 'u32[]', space=smem, size = 0x4, offset = 0x4, fixed_abs, tag = 'smem constant byte address 0x4 - core index']
  #allocation1 [shape = 'u32[144,128]{1,0:T(1,128)}', space=vmem, size = 0x12000, scoped, tag = 'internal scratch']
  #allocation2 [shape = 'f32[16,128]{1,0:T(8,128)}', space=vmem, size = 0x2000, scoped, tag = 'scratch operand']
  %s0 = inlined_call_operand.hbm [shape: bf16[16,128], index: 0, kind: input, shape index: {}]
  %s1 = inlined_call_operand.hbm [shape: bf16[128,128], index: 1, kind: input, shape index: {}]
  %s2 = inlined_call_operand.vmem [shape: f32[1,128], index: 2, kind: input, shape index: {}]
  %s3 = inlined_call_operand.hbm [shape: f32[16,128], index: 3, kind: output, shape index: {}]
  %s4 = sld [smem:[#allocation0]]
  $region38: #{tpu_custom_call.1} parent=0
    _
  %s6 = ssub.s32 1, %s4
  %s7 = scalar_select 0, %s6, %s4
  $region1: #{tpu_custom_call.1} parent=0
    #allocation3 [shape = 'u8[4096]{0}', space=vmem, size = 0x1000, scoped, tag = 'input window, operand 0, single buffered']
    #allocation4 [shape = 's32[1]{0}', space=sflag, size = 0x4, scoped, tag = 'scoped memory for tpu_custom_call.1']
    #allocation5 [shape = 's32[1]{0}', space=sflag, size = 0x4, scoped, tag = 'scoped memory for tpu_custom_call.1']
    #allocation6 [shape = 'u8[32768]{0}', space=vmem, size = 0x8000, scoped, tag = 'input window, operand 1, single buffered']
    #allocation7 [shape = 's32[1]{0}', space=sflag, size = 0x4, scoped, tag = 'scoped memory for tpu_custom_call.1']
    #allocation8 [shape = 'u8[8192]{0}', space=vmem, size = 0x2000, scoped, tag = 'output window, operand 0, single buffered']
    %8 = vsyncpa [#allocation4], 0
    %9 = vsyncpa [#allocation7], 0
    %10 = vsyncpa [#allocation5], 0
    // Predicated region
    $region2: #{tpu_custom_call.1} parent=1 // pred_check
      _
    $region3: #{tpu_custom_call.1} parent=1 // pred_check_branch
      %12 = sbr.rel (0) target = $region5
    $region4: #{tpu_custom_call.1} parent=1 // pred_region
      %s14 = ssub.s32 128, 128
      %15 = vsyncadd [#allocation4], %s14
      %s16 = sshll.u32 [#allocation3], 4
      %s17 = int_to_ptr.vmem [resolvable:$true] %s16
      %22 = dma.hbm_to_vmem [thread:$0]  %s0, 128, %s17, [#allocation4], 64, 64, 4
    $region5: #{tpu_custom_call.1} parent=1 // pred_fallthru
      _
    // Predicated region
    $region6: #{tpu_custom_call.1} parent=1 // pred_check
      _
    $region7: #{tpu_custom_call.1} parent=1 // pred_check_branch
      %24 = sbr.rel (0) target = $region9
    $region8: #{tpu_custom_call.1} parent=1 // pred_region
      %s26 = ssub.s32 1024, 1024
      %27 = vsyncadd [#allocation7], %s26
      %s28 = sshll.u32 [#allocation6], 4
      %s29 = int_to_ptr.vmem [resolvable:$true] %s28
      %34 = dma.hbm_to_vmem [thread:$0]  %s1, 1024, %s29, [#allocation7], 64, 64, 4
    $region9: #{tpu_custom_call.1} parent=1 // pred_fallthru
      _
    // Predicated region
    $region10: #{tpu_custom_call.1} parent=1 // pred_check
      _
    $region11: #{tpu_custom_call.1} parent=1 // pred_check_branch
      %36 = sbr.rel (0) target = $region13
    $region12: #{tpu_custom_call.1} parent=1 // pred_region
      _
    $region13: #{tpu_custom_call.1} parent=1 // pred_fallthru
      _
    // Predicated region
    $region14: #{tpu_custom_call.1} parent=1 // pred_check
      _
    $region15: #{tpu_custom_call.1} parent=1 // pred_check_branch
      %38 = sbr.rel (0) target = $region17
    $region16: #{tpu_custom_call.1} parent=1 // pred_region
      %39 = dma.done [#allocation4], 128
    $region17: #{tpu_custom_call.1} parent=1 // pred_fallthru
      _
    // Predicated region
    $region18: #{tpu_custom_call.1} parent=1 // pred_check
      _
    $region19: #{tpu_custom_call.1} parent=1 // pred_check_branch
      %41 = sbr.rel (0) target = $region21
    $region20: #{tpu_custom_call.1} parent=1 // pred_region
      %42 = dma.done [#allocation7], 1024
    $region21: #{tpu_custom_call.1} parent=1 // pred_fallthru
      _
    %p44 = scmp.eq.s32.totalorder 0, 0
    // Predicated region
    $region22: #{tpu_custom_call.1} parent=1 // pred_check
      %p45 = pneg %p44
    $region23: #{tpu_custom_call.1} parent=1 // pred_check_branch
      %47 = sbr.rel (%p45) target = $region25
    $region24: #{tpu_custom_call.1} parent=1 // pred_region
      %48 = vst [vmem:[#allocation2] sm:$0xff] 0.0
      %49 = vst [vmem:[#allocation2 + $0x8] sm:$0xff] 0.0
    $region25: #{tpu_custom_call.1} parent=1 // pred_fallthru
      _
    %v50 = vld [vmem:[#allocation2] sm:$0xff]
    %v51 = vld [vmem:[#allocation2 + $0x8] sm:$0xff]
    %v52 = vld [vmem:[#allocation3] sm:$0xf]
    %v53 = vld [vmem:[#allocation3 + $0x4] sm:$0xf]
    %v54 = vld [vmem:[#allocation6] sm:$0xf]
    %v55 = vld [vmem:[#allocation6 + $0x4] sm:$0xf]
    %v56 = vld [vmem:[#allocation6 + $0x8] sm:$0xf]
    %v57 = vld [vmem:[#allocation6 + $0xc] sm:$0xf]
    %v58 = vld [vmem:[#allocation6 + $0x10] sm:$0xf]
    %v59 = vld [vmem:[#allocation6 + $0x14] sm:$0xf]
    %v60 = vld [vmem:[#allocation6 + $0x18] sm:$0xf]
    %v61 = vld [vmem:[#allocation6 + $0x1c] sm:$0xf]
    %v62 = vld [vmem:[#allocation6 + $0x20] sm:$0xf]
    %v63 = vld [vmem:[#allocation6 + $0x24] sm:$0xf]
    %v64 = vld [vmem:[#allocation6 + $0x28] sm:$0xf]
    %v65 = vld [vmem:[#allocation6 + $0x2c] sm:$0xf]
    %v66 = vld [vmem:[#allocation6 + $0x30] sm:$0xf]
    %v67 = vld [vmem:[#allocation6 + $0x34] sm:$0xf]
    %v68 = vld [vmem:[#allocation6 + $0x38] sm:$0xf]
    %v69 = vld [vmem:[#allocation6 + $0x3c] sm:$0xf]
    %v72 = vunpack.c.l.b16 %v52
    %v73 = vunpack.c.l.b16 %v53
    %v74 = vpack.c.b16 %v73, %v72
    %v92 = vunpack.c.l.b16 %v54
    %v93 = vunpack.c.l.b16 %v55
    %v94 = vunpack.c.l.b16 %v56
    %v95 = vunpack.c.l.b16 %v57
    %v96 = vunpack.c.l.b16 %v58
    %v97 = vunpack.c.l.b16 %v59
    %v98 = vunpack.c.l.b16 %v60
    %v99 = vunpack.c.l.b16 %v61
    %v100 = vunpack.c.l.b16 %v62
    %v101 = vunpack.c.l.b16 %v63
    %v102 = vunpack.c.l.b16 %v64
    %v103 = vunpack.c.l.b16 %v65
    %v104 = vunpack.c.l.b16 %v66
    %v105 = vunpack.c.l.b16 %v67
    %v106 = vunpack.c.l.b16 %v68
    %v107 = vunpack.c.l.b16 %v69
    %v108 = vpack.c.b16 %v93, %v92
    %v109 = vpack.c.b16 %v95, %v94
    %v110 = vpack.c.b16 %v97, %v96
    %v111 = vpack.c.b16 %v99, %v98
    %v112 = vpack.c.b16 %v101, %v100
    %v113 = vpack.c.b16 %v103, %v102
    %v114 = vpack.c.b16 %v105, %v104
    %v115 = vpack.c.b16 %v107, %v106
    %124 = vmatprep.subr.bf16.mxu0 0
    %125 = vmatpush1.bf16.msra.mxu0 %v108
    %126 = vmatprep.subr.bf16.mxu0 0
    %127 = vmatpush1.bf16.msra.mxu0 %v109
    %128 = vmatprep.subr.bf16.mxu0 0
    %129 = vmatpush1.bf16.msra.mxu0 %v110
    %130 = vmatprep.subr.bf16.mxu0 0
    %131 = vmatpush1.bf16.msra.mxu0 %v111
    %132 = vmatprep.subr.bf16.mxu0 0
    %133 = vmatpush1.bf16.msra.mxu0 %v112
    %134 = vmatprep.subr.bf16.mxu0 0
    %135 = vmatpush1.bf16.msra.mxu0 %v113
    %136 = vmatprep.subr.bf16.mxu0 0
    %137 = vmatpush1.bf16.msra.mxu0 %v114
    %138 = vmatprep.subr.bf16.mxu0 0
    %139 = vmatpush1.bf16.msra.mxu0 %v115
    %140 = vmatprep.subr.bf16.mxu0 0
    %141 = vmatpush1.bf16.msra.mxu0 0
    %142 = vmatprep.subr.bf16.mxu0 0
    %143 = vmatpush1.bf16.msra.mxu0 0
    %144 = vmatprep.subr.bf16.mxu0 0
    %145 = vmatpush1.bf16.msra.mxu0 0
    %146 = vmatprep.subr.bf16.mxu0 0
    %147 = vmatpush1.bf16.msra.mxu0 0
    %148 = vmatprep.subr.bf16.mxu0 0
    %149 = vmatpush1.bf16.msra.mxu0 0
    %150 = vmatprep.subr.bf16.mxu0 0
    %151 = vmatpush1.bf16.msra.mxu0 0
    %152 = vmatprep.subr.bf16.mxu0 0
    %153 = vmatpush1.bf16.msra.mxu0 0
    %154 = vmatprep.subr.bf16.mxu0 0
    %155 = vmatpush1.bf16.msra.mxu0 0
    %156 = vmatprep.mubr.bf16.mxu0 0
    %157 = vmatmul.mubr.bf16.gmra.mrb[0].mxu0 %v74
    %v158 = vpop.f32.mrb[0].mxu0
    %v159 = vadd.f32 0.0, %v158
    %v160 = vpop.f32.mrb[0].mxu0
    %v161 = vpop.f32.mrb[0].mxu0
    %v162 = vadd.f32 0.0, %v161
    %v163 = vpop.f32.mrb[0].mxu0
    %164 = vdwg.mxu0
    %v165 = vadd.f32 %v50, %v159
    %v166 = vadd.f32 %v51, %v162
    %167 = vst [vmem:[#allocation2] sm:$0xff] %v165
    %168 = vst [vmem:[#allocation2 + $0x8] sm:$0xff] %v166
    // Predicated region
    $region26: #{tpu_custom_call.1} parent=1 // pred_check
      %p169 = pneg %p44
    $region27: #{tpu_custom_call.1} parent=1 // pred_check_branch
      %171 = sbr.rel (%p169) target = $region29
    $region28: #{tpu_custom_call.1} parent=1 // pred_region
      %v172 = vld [vmem:[#allocation2] sm:$0xff]
      %v173 = vld [vmem:[#allocation2 + $0x8] sm:$0xff]
      %v174 = vld [vmem:[%s2] sm:$0x1]
      %v176 = vlaneseq
      %v177 = vshrl.u32 %v176, 7
      %v178 = vsub.s32 0, %v177
      %v179 = vrot.slane %v174, %v178
      %v181 = vadd.f32 %v172, %v179
      %v182 = vadd.f32 %v173, %v179
      %183 = vst [vmem:[#allocation8] sm:$0xff] %v181
      %184 = vst [vmem:[#allocation8 + $0x8] sm:$0xff] %v182
    $region29: #{tpu_custom_call.1} parent=1 // pred_fallthru
      _
    // Predicated region
    $region30: #{tpu_custom_call.1} parent=1 // pred_check
      _
    $region31: #{tpu_custom_call.1} parent=1 // pred_check_branch
      %186 = sbr.rel (0) target = $region33
    $region32: #{tpu_custom_call.1} parent=1 // pred_region
      %s188 = ssub.s32 256, 256
      %189 = vsyncadd [#allocation5], %s188
      %s190 = sshll.u32 [#allocation8], 4
      %s191 = int_to_ptr.vmem [resolvable:$true] %s190
      %196 = dma.vmem_to_hbm [thread:$0]  %s191, 256, %s3, [#allocation5], 128, 128, 8
    $region33: #{tpu_custom_call.1} parent=1 // pred_fallthru
      _
    // Predicated region
    $region34: #{tpu_custom_call.1} parent=1 // pred_check
      _
    $region35: #{tpu_custom_call.1} parent=1 // pred_check_branch
      %198 = sbr.rel (0) target = $region37
    $region36: #{tpu_custom_call.1} parent=1 // pred_region
      %199 = dma.done [#allocation5], 256
    $region37: #{tpu_custom_call.1} parent=1 // pred_fallthru
      _
    %200 = vsyncpa [#allocation4], 1
    %201 = vsyncpa [#allocation7], 1
    %202 = vsyncpa [#allocation5], 1

</llo_original>
